<compile_context>
chip_gen: v5e
topology: v5e:2x2
jax: 0.10.0
libtpu: 0.0.40
codegen_flags: <defaults>
</compile_context>

<pallas_src>
import functools
import math

import jax
import jax.numpy as jnp
from jax import lax
from jax.experimental import pallas as pl
from jax.experimental.pallas import tpu as pltpu


def _encoder_kernel(x_ref, s_ref, m_ref,
                    wq_ref, wk_ref, wv_ref, bq_ref, bk_ref, bv_ref,
                    g_ref, bta_ref, w1_ref, b1_ref, w2_ref, b2_ref,
                    o_ref, *, scale, eps):
    x = x_ref[...].astype(jnp.float32)                      # (S, D)

    # ---- fused Q/K/V projections ----
    q = jnp.dot(x, wq_ref[...].astype(jnp.float32),
                preferred_element_type=jnp.float32) + bq_ref[...].astype(jnp.float32)
    k = jnp.dot(x, wk_ref[...].astype(jnp.float32),
                preferred_element_type=jnp.float32) + bk_ref[...].astype(jnp.float32)
    v = jnp.dot(x, wv_ref[...].astype(jnp.float32),
                preferred_element_type=jnp.float32) + bv_ref[...].astype(jnp.float32)

    # ---- InrAttn: scores = QK^T/sqrt(D) + str_mat, mask, softmax, @V ----
    scores = lax.dot_general(q, k, (((1,), (1,)), ((), ())),
                             preferred_element_type=jnp.float32) * scale
    scores = scores + s_ref[...].astype(jnp.float32)
    scores = jnp.where(m_ref[...] != 0, scores, jnp.float32(-1e9))
    scores = scores - jnp.max(scores, axis=-1, keepdims=True)
    p = jnp.exp(scores)
    p = p / jnp.sum(p, axis=-1, keepdims=True)
    attn = jnp.dot(p, v, preferred_element_type=jnp.float32)

    # SubLayerConnect[0] residual (dropout = identity in eval mode).
    x1 = x + attn

    # ---- LayerNorm + FFN + residual (SubLayerConnect[1]) ----
    mu = jnp.mean(x1, axis=-1, keepdims=True)
    xc = x1 - mu
    var = jnp.mean(xc * xc, axis=-1, keepdims=True)
    xn = xc * lax.rsqrt(var + eps)
    xn = xn * g_ref[...].astype(jnp.float32) + bta_ref[...].astype(jnp.float32)

    h = jnp.dot(xn, w1_ref[...].astype(jnp.float32), preferred_element_type=jnp.float32)
    h = jnp.maximum(h + b1_ref[...].astype(jnp.float32), 0.0)  # TODO(synk): FFN activation assumed ReLU
    y = jnp.dot(h, w2_ref[...].astype(jnp.float32), preferred_element_type=jnp.float32)
    y = y + b2_ref[...].astype(jnp.float32)

    o_ref[...] = (x1 + y).astype(o_ref.dtype)


@jax.jit
def encoder_layer_forward(x, str_mat, attn_mask, params):
    """EncoderLayer.forward (eval mode). x: (B, S, D); str_mat/attn_mask: (B, S, S)."""
    B, S, D = x.shape
    H = params["w1"].shape[1]
    scale = 1.0 / math.sqrt(D)

    bsd = pl.BlockSpec((None, S, D), lambda b: (b, 0, 0))
    bss = pl.BlockSpec((None, S, S), lambda b: (b, 0, 0))
    w_dd = pl.BlockSpec((D, D), lambda b: (0, 0))
    w_dh = pl.BlockSpec((D, H), lambda b: (0, 0))
    w_hd = pl.BlockSpec((H, D), lambda b: (0, 0))
    vec_d = pl.BlockSpec((1, D), lambda b: (0, 0))
    vec_h = pl.BlockSpec((1, H), lambda b: (0, 0))

    flops = B * (3 * 2 * S * D * D          # QKV projections
                 + 2 * 2 * S * S * D        # QK^T and PV
                 + 2 * 2 * S * D * H)       # FFN
    transcendentals = B * (S * S + S)       # exp + rsqrt
    bytes_accessed = 4 * (2 * B * S * D + 2 * B * S * S   # x, out, str_mat, mask
                          + 3 * D * D + 2 * D * H          # weights
                          + 3 * D + H + 3 * D)             # biases + LN params

    return pl.pallas_call(
        functools.partial(_encoder_kernel, scale=scale, eps=1e-5),
        out_shape=jax.ShapeDtypeStruct((B, S, D), x.dtype),
        grid=(B,),
        in_specs=[bsd, bss, bss,
                  w_dd, w_dd, w_dd, vec_d, vec_d, vec_d,
                  vec_d, vec_d, w_dh, vec_h, w_hd, vec_d],
        out_specs=bsd,
        compiler_params=pltpu.CompilerParams(
            dimension_semantics=("parallel",),
            vmem_limit_bytes=64 * 1024 * 1024),
        cost_estimate=pl.CostEstimate(flops=flops, transcendentals=transcendentals,
                                      bytes_accessed=bytes_accessed),
    )(x, str_mat, attn_mask,
      params["wq"], params["wk"], params["wv"],
      params["bq"], params["bk"], params["bv"],
      params["ln_gamma"], params["ln_beta"],
      params["w1"], params["b1"], params["w2"], params["b2"])


if __name__ == "__main__":
    B, S, D, EXP = 2, 8, 32, 2
    H = D * EXP

    key = jax.random.PRNGKey(0)
    ks = jax.random.split(key, 12)

    def init(k, shape, scale=0.05):
        return (scale * jax.random.normal(k, shape)).astype(jnp.float32)

    params = {
        "wq": init(ks[0], (D, D)), "bq": init(ks[1], (1, D)),
        "wk": init(ks[2], (D, D)), "bk": init(ks[3], (1, D)),
        "wv": init(ks[4], (D, D)), "bv": init(ks[5], (1, D)),
        "ln_gamma": jnp.ones((1, D), jnp.float32),
        "ln_beta": jnp.zeros((1, D), jnp.float32),
        "w1": init(ks[6], (D, H)), "b1": init(ks[7], (1, H)),
        "w2": init(ks[8], (H, D)), "b2": init(ks[9], (1, D)),
    }

    x = jax.random.normal(ks[10], (B, S, D), dtype=jnp.float32)
    str_mat = init(ks[11], (B, S, S), scale=0.1)
    attn_mask = jnp.ones((B, S, S), jnp.float32).at[1, :, S - 2:].set(0.0)

    out = jax.block_until_ready(encoder_layer_forward(x, str_mat, attn_mask, params))

    # Plain-JAX reference (same assumed semantics, eval mode).
    scale = 1.0 / math.sqrt(D)
    q_r = x @ params["wq"] + params["bq"][0]
    k_r = x @ params["wk"] + params["bk"][0]
    v_r = x @ params["wv"] + params["bv"][0]
    scores = jnp.einsum("bqd,bkd->bqk", q_r, k_r) * scale + str_mat
    scores = jnp.where(attn_mask != 0, scores, -1e9)
    attn = jax.nn.softmax(scores, axis=-1) @ v_r
    x1 = x + attn
    mu = x1.mean(-1, keepdims=True)
    var = ((x1 - mu) ** 2).mean(-1, keepdims=True)
    xn = (x1 - mu) / jnp.sqrt(var + 1e-5) * params["ln_gamma"][0] + params["ln_beta"][0]
    h_r = jnp.maximum(xn @ params["w1"] + params["b1"][0], 0.0)
    ref = x1 + h_r @ params["w2"] + params["b2"][0]

    assert out.shape == (B, S, D)
    err = jnp.max(jnp.abs(out - ref))
    assert jnp.allclose(out, ref, atol=1e-3, rtol=1e-3), f"mismatch vs reference, max abs err {err}"

    print("KERNEL_OK")
</pallas_src>

<mosaic_0001>
module attributes {stable_mosaic.version = 11 : i64} {
  func.func @_encoder_kernel(%arg0: i32, %arg1: memref<1x8x32xf32, #tpu.memory_space<vmem>>, %arg2: memref<1x8x8xf32, #tpu.memory_space<vmem>>, %arg3: memref<1x8x8xf32, #tpu.memory_space<vmem>>, %arg4: memref<32x32xf32, #tpu.memory_space<vmem>>, %arg5: memref<32x32xf32, #tpu.memory_space<vmem>>, %arg6: memref<32x32xf32, #tpu.memory_space<vmem>>, %arg7: memref<1x32xf32, #tpu.memory_space<vmem>>, %arg8: memref<1x32xf32, #tpu.memory_space<vmem>>, %arg9: memref<1x32xf32, #tpu.memory_space<vmem>>, %arg10: memref<1x32xf32, #tpu.memory_space<vmem>>, %arg11: memref<1x32xf32, #tpu.memory_space<vmem>>, %arg12: memref<32x64xf32, #tpu.memory_space<vmem>>, %arg13: memref<1x64xf32, #tpu.memory_space<vmem>>, %arg14: memref<64x32xf32, #tpu.memory_space<vmem>>, %arg15: memref<1x32xf32, #tpu.memory_space<vmem>>, %arg16: memref<1x8x32xf32, #tpu.memory_space<vmem>>) attributes {dimension_semantics = [#tpu.dimension_semantics<parallel>], iteration_bounds = array<i64: 2>, scalar_prefetch = 0 : i64, scratch_operands = 0 : i64, tpu.core_type = #tpu.core_type<tc>, window_params = [{transform_indices = @transform_0, window_bounds = array<i64: 1, 8, 32>}, {transform_indices = @transform_1, window_bounds = array<i64: 1, 8, 8>}, {transform_indices = @transform_2, window_bounds = array<i64: 1, 8, 8>}, {pipeline_mode = #tpu.pipeline_mode<synchronous>, transform_indices = @transform_3, window_bounds = array<i64: 32, 32>}, {pipeline_mode = #tpu.pipeline_mode<synchronous>, transform_indices = @transform_4, window_bounds = array<i64: 32, 32>}, {pipeline_mode = #tpu.pipeline_mode<synchronous>, transform_indices = @transform_5, window_bounds = array<i64: 32, 32>}, {pipeline_mode = #tpu.pipeline_mode<synchronous>, transform_indices = @transform_6, window_bounds = array<i64: 1, 32>}, {pipeline_mode = #tpu.pipeline_mode<synchronous>, transform_indices = @transform_7, window_bounds = array<i64: 1, 32>}, {pipeline_mode = #tpu.pipeline_mode<synchronous>, transform_indices = @transform_8, window_bounds = array<i64: 1, 32>}, {pipeline_mode = #tpu.pipeline_mode<synchronous>, transform_indices = @transform_9, window_bounds = array<i64: 1, 32>}, {pipeline_mode = #tpu.pipeline_mode<synchronous>, transform_indices = @transform_10, window_bounds = array<i64: 1, 32>}, {pipeline_mode = #tpu.pipeline_mode<synchronous>, transform_indices = @transform_11, window_bounds = array<i64: 32, 64>}, {pipeline_mode = #tpu.pipeline_mode<synchronous>, transform_indices = @transform_12, window_bounds = array<i64: 1, 64>}, {pipeline_mode = #tpu.pipeline_mode<synchronous>, transform_indices = @transform_13, window_bounds = array<i64: 64, 32>}, {pipeline_mode = #tpu.pipeline_mode<synchronous>, transform_indices = @transform_14, window_bounds = array<i64: 1, 32>}, {transform_indices = @transform_15, window_bounds = array<i64: 1, 8, 32>}]} {
    %c0 = arith.constant 0 : index
    %c0_0 = arith.constant 0 : index
    %c0_1 = arith.constant 0 : index
    %0 = vector.load %arg1[%c0, %c0_0, %c0_1] : memref<1x8x32xf32, #tpu.memory_space<vmem>>, vector<1x8x32xf32>
    %1 = vector.shape_cast %0 : vector<1x8x32xf32> to vector<8x32xf32>
    %c0_2 = arith.constant 0 : index
    %c0_3 = arith.constant 0 : index
    %2 = vector.load %arg4[%c0_2, %c0_3] : memref<32x32xf32, #tpu.memory_space<vmem>>, vector<32x32xf32>
    %cst = arith.constant dense<0.000000e+00> : vector<8x32xf32>
    %3 = tpu.matmul %1, %2, %cst {dimension_numbers = #tpu.dot_dimension_numbers<[1], [0], [0], [1], [0, 0, 1, 1], [], []>} : vector<8x32xf32>, vector<32x32xf32>, vector<8x32xf32> -> vector<8x32xf32>
    %c0_4 = arith.constant 0 : index
    %c0_5 = arith.constant 0 : index
    %4 = vector.load %arg7[%c0_4, %c0_5] : memref<1x32xf32, #tpu.memory_space<vmem>>, vector<1x32xf32>
    %5 = vector.broadcast %4 : vector<1x32xf32> to vector<8x32xf32>
    %6 = arith.addf %3, %5 : vector<8x32xf32>
    %c0_6 = arith.constant 0 : index
    %c0_7 = arith.constant 0 : index
    %7 = vector.load %arg5[%c0_6, %c0_7] : memref<32x32xf32, #tpu.memory_space<vmem>>, vector<32x32xf32>
    %cst_8 = arith.constant dense<0.000000e+00> : vector<8x32xf32>
    %8 = tpu.matmul %1, %7, %cst_8 {dimension_numbers = #tpu.dot_dimension_numbers<[1], [0], [0], [1], [0, 0, 1, 1], [], []>} : vector<8x32xf32>, vector<32x32xf32>, vector<8x32xf32> -> vector<8x32xf32>
    %c0_9 = arith.constant 0 : index
    %c0_10 = arith.constant 0 : index
    %9 = vector.load %arg8[%c0_9, %c0_10] : memref<1x32xf32, #tpu.memory_space<vmem>>, vector<1x32xf32>
    %10 = vector.broadcast %9 : vector<1x32xf32> to vector<8x32xf32>
    %11 = arith.addf %8, %10 : vector<8x32xf32>
    %c0_11 = arith.constant 0 : index
    %c0_12 = arith.constant 0 : index
    %12 = vector.load %arg6[%c0_11, %c0_12] : memref<32x32xf32, #tpu.memory_space<vmem>>, vector<32x32xf32>
    %cst_13 = arith.constant dense<0.000000e+00> : vector<8x32xf32>
    %13 = tpu.matmul %1, %12, %cst_13 {dimension_numbers = #tpu.dot_dimension_numbers<[1], [0], [0], [1], [0, 0, 1, 1], [], []>} : vector<8x32xf32>, vector<32x32xf32>, vector<8x32xf32> -> vector<8x32xf32>
    %c0_14 = arith.constant 0 : index
    %c0_15 = arith.constant 0 : index
    %14 = vector.load %arg9[%c0_14, %c0_15] : memref<1x32xf32, #tpu.memory_space<vmem>>, vector<1x32xf32>
    %15 = vector.broadcast %14 : vector<1x32xf32> to vector<8x32xf32>
    %16 = arith.addf %13, %15 : vector<8x32xf32>
    %cst_16 = arith.constant dense<0.000000e+00> : vector<8x8xf32>
    %17 = tpu.matmul %6, %11, %cst_16 {dimension_numbers = #tpu.dot_dimension_numbers<[1], [1], [0], [0], [0, 0, 1, 0], [], []>} : vector<8x32xf32>, vector<8x32xf32>, vector<8x8xf32> -> vector<8x8xf32>
    %cst_17 = arith.constant 0.176776692 : f32
    %18 = vector.broadcast %cst_17 : f32 to vector<8x8xf32>
    %19 = arith.mulf %17, %18 : vector<8x8xf32>
    %c0_18 = arith.constant 0 : index
    %c0_19 = arith.constant 0 : index
    %c0_20 = arith.constant 0 : index
    %20 = vector.load %arg2[%c0_18, %c0_19, %c0_20] : memref<1x8x8xf32, #tpu.memory_space<vmem>>, vector<1x8x8xf32>
    %21 = vector.shape_cast %20 : vector<1x8x8xf32> to vector<8x8xf32>
    %22 = arith.addf %19, %21 : vector<8x8xf32>
    %c0_21 = arith.constant 0 : index
    %c0_22 = arith.constant 0 : index
    %c0_23 = arith.constant 0 : index
    %23 = vector.load %arg3[%c0_21, %c0_22, %c0_23] : memref<1x8x8xf32, #tpu.memory_space<vmem>>, vector<1x8x8xf32>
    %24 = vector.shape_cast %23 : vector<1x8x8xf32> to vector<8x8xf32>
    %cst_24 = arith.constant 0.000000e+00 : f32
    %25 = vector.broadcast %cst_24 : f32 to vector<8x8xf32>
    %26 = arith.cmpf one, %24, %25 : vector<8x8xf32>
    %cst_25 = arith.constant -1.000000e+09 : f32
    %27 = vector.broadcast %cst_25 : f32 to vector<8x8xf32>
    %28 = arith.select %26, %22, %27 : vector<8x8xi1>, vector<8x8xf32>
    %cst_26 = arith.constant dense<0xFF800000> : vector<8xf32>
    %29 = vector.multi_reduction <maximumf>, %28, %cst_26 [1] : vector<8x8xf32> to vector<8xf32>
    %30 = vector.shape_cast %29 : vector<8xf32> to vector<8x1xf32>
    %31 = vector.broadcast %30 : vector<8x1xf32> to vector<8x8xf32>
    %32 = arith.subf %28, %31 : vector<8x8xf32>
    %33 = math.exp %32 : vector<8x8xf32>
    %cst_27 = arith.constant dense<0.000000e+00> : vector<8xf32>
    %34 = vector.multi_reduction <add>, %33, %cst_27 [1] : vector<8x8xf32> to vector<8xf32>
    %35 = vector.shape_cast %34 : vector<8xf32> to vector<8x1xf32>
    %36 = vector.broadcast %35 : vector<8x1xf32> to vector<8x8xf32>
    %37 = arith.divf %33, %36 : vector<8x8xf32>
    %cst_28 = arith.constant dense<0.000000e+00> : vector<8x32xf32>
    %38 = tpu.matmul %37, %16, %cst_28 {dimension_numbers = #tpu.dot_dimension_numbers<[1], [0], [0], [1], [0, 0, 1, 1], [], []>} : vector<8x8xf32>, vector<8x32xf32>, vector<8x32xf32> -> vector<8x32xf32>
    %39 = arith.addf %1, %38 : vector<8x32xf32>
    %cst_29 = arith.constant dense<0.000000e+00> : vector<8xf32>
    %40 = vector.multi_reduction <add>, %39, %cst_29 [1] : vector<8x32xf32> to vector<8xf32>
    %41 = vector.shape_cast %40 : vector<8xf32> to vector<8x1xf32>
    %cst_30 = arith.constant 3.200000e+01 : f32
    %42 = vector.broadcast %cst_30 : f32 to vector<8x1xf32>
    %43 = arith.divf %41, %42 : vector<8x1xf32>
    %44 = vector.broadcast %43 : vector<8x1xf32> to vector<8x32xf32>
    %45 = arith.subf %39, %44 : vector<8x32xf32>
    %46 = arith.mulf %45, %45 : vector<8x32xf32>
    %cst_31 = arith.constant dense<0.000000e+00> : vector<8xf32>
    %47 = vector.multi_reduction <add>, %46, %cst_31 [1] : vector<8x32xf32> to vector<8xf32>
    %48 = vector.shape_cast %47 : vector<8xf32> to vector<8x1xf32>
    %cst_32 = arith.constant 3.200000e+01 : f32
    %49 = vector.broadcast %cst_32 : f32 to vector<8x1xf32>
    %50 = arith.divf %48, %49 : vector<8x1xf32>
    %cst_33 = arith.constant 9.99999974E-6 : f32
    %51 = vector.broadcast %cst_33 : f32 to vector<8x1xf32>
    %52 = arith.addf %50, %51 : vector<8x1xf32>
    %53 = math.rsqrt %52 : vector<8x1xf32>
    %54 = vector.broadcast %53 : vector<8x1xf32> to vector<8x32xf32>
    %55 = arith.mulf %45, %54 : vector<8x32xf32>
    %c0_34 = arith.constant 0 : index
    %c0_35 = arith.constant 0 : index
    %56 = vector.load %arg10[%c0_34, %c0_35] : memref<1x32xf32, #tpu.memory_space<vmem>>, vector<1x32xf32>
    %57 = vector.broadcast %56 : vector<1x32xf32> to vector<8x32xf32>
    %58 = arith.mulf %55, %57 : vector<8x32xf32>
    %c0_36 = arith.constant 0 : index
    %c0_37 = arith.constant 0 : index
    %59 = vector.load %arg11[%c0_36, %c0_37] : memref<1x32xf32, #tpu.memory_space<vmem>>, vector<1x32xf32>
    %60 = vector.broadcast %59 : vector<1x32xf32> to vector<8x32xf32>
    %61 = arith.addf %58, %60 : vector<8x32xf32>
    %c0_38 = arith.constant 0 : index
    %c0_39 = arith.constant 0 : index
    %62 = vector.load %arg12[%c0_38, %c0_39] : memref<32x64xf32, #tpu.memory_space<vmem>>, vector<32x64xf32>
    %cst_40 = arith.constant dense<0.000000e+00> : vector<8x64xf32>
    %63 = tpu.matmul %61, %62, %cst_40 {dimension_numbers = #tpu.dot_dimension_numbers<[1], [0], [0], [1], [0, 0, 1, 1], [], []>} : vector<8x32xf32>, vector<32x64xf32>, vector<8x64xf32> -> vector<8x64xf32>
    %c0_41 = arith.constant 0 : index
    %c0_42 = arith.constant 0 : index
    %64 = vector.load %arg13[%c0_41, %c0_42] : memref<1x64xf32, #tpu.memory_space<vmem>>, vector<1x64xf32>
    %65 = vector.broadcast %64 : vector<1x64xf32> to vector<8x64xf32>
    %66 = arith.addf %63, %65 : vector<8x64xf32>
    %cst_43 = arith.constant 0.000000e+00 : f32
    %67 = vector.broadcast %cst_43 : f32 to vector<8x64xf32>
    %68 = arith.maximumf %66, %67 : vector<8x64xf32>
    %c0_44 = arith.constant 0 : index
    %c0_45 = arith.constant 0 : index
    %69 = vector.load %arg14[%c0_44, %c0_45] : memref<64x32xf32, #tpu.memory_space<vmem>>, vector<64x32xf32>
    %cst_46 = arith.constant dense<0.000000e+00> : vector<8x32xf32>
    %70 = tpu.matmul %68, %69, %cst_46 {dimension_numbers = #tpu.dot_dimension_numbers<[1], [0], [0], [1], [0, 0, 1, 1], [], []>} : vector<8x64xf32>, vector<64x32xf32>, vector<8x32xf32> -> vector<8x32xf32>
    %c0_47 = arith.constant 0 : index
    %c0_48 = arith.constant 0 : index
    %71 = vector.load %arg15[%c0_47, %c0_48] : memref<1x32xf32, #tpu.memory_space<vmem>>, vector<1x32xf32>
    %72 = vector.broadcast %71 : vector<1x32xf32> to vector<8x32xf32>
    %73 = arith.addf %70, %72 : vector<8x32xf32>
    %74 = arith.addf %39, %73 : vector<8x32xf32>
    %c0_49 = arith.constant 0 : index
    %c0_50 = arith.constant 0 : index
    %c0_51 = arith.constant 0 : index
    %75 = vector.load %arg16[%c0_49, %c0_50, %c0_51] : memref<1x8x32xf32, #tpu.memory_space<vmem>>, vector<1x8x32xf32>
    %76 = vector.shape_cast %75 : vector<1x8x32xf32> to vector<8x32xf32>
    %77 = vector.shape_cast %74 : vector<8x32xf32> to vector<1x8x32xf32>
    tpu.vector_store %arg16[%c0_49, %c0_50, %c0_51], %77 {strides = array<i32>} : memref<1x8x32xf32, #tpu.memory_space<vmem>>, vector<1x8x32xf32>,
    return
  }
  func.func @transform_0(%arg0: i32) -> (i32, i32, i32) {
    %c0_i32 = arith.constant 0 : i32
    %c0_i32_0 = arith.constant 0 : i32
    %c0_i32_1 = arith.constant 0 : i32
    return %arg0, %c0_i32, %c0_i32_0 : i32, i32, i32
  }
  func.func @transform_1(%arg0: i32) -> (i32, i32, i32) {
    %c0_i32 = arith.constant 0 : i32
    %c0_i32_0 = arith.constant 0 : i32
    %c0_i32_1 = arith.constant 0 : i32
    return %arg0, %c0_i32, %c0_i32_0 : i32, i32, i32
  }
  func.func @transform_2(%arg0: i32) -> (i32, i32, i32) {
    %c0_i32 = arith.constant 0 : i32
    %c0_i32_0 = arith.constant 0 : i32
    %c0_i32_1 = arith.constant 0 : i32
    return %arg0, %c0_i32, %c0_i32_0 : i32, i32, i32
  }
  func.func @transform_3(%arg0: i32) -> (i32, i32) {
    %c0_i32 = arith.constant 0 : i32
    %c0_i32_0 = arith.constant 0 : i32
    %c0_i32_1 = arith.constant 0 : i32
    return %c0_i32, %c0_i32_0 : i32, i32
  }
  func.func @transform_4(%arg0: i32) -> (i32, i32) {
    %c0_i32 = arith.constant 0 : i32
    %c0_i32_0 = arith.constant 0 : i32
    %c0_i32_1 = arith.constant 0 : i32
    return %c0_i32, %c0_i32_0 : i32, i32
  }
  func.func @transform_5(%arg0: i32) -> (i32, i32) {
    %c0_i32 = arith.constant 0 : i32
    %c0_i32_0 = arith.constant 0 : i32
    %c0_i32_1 = arith.constant 0 : i32
    return %c0_i32, %c0_i32_0 : i32, i32
  }
  func.func @transform_6(%arg0: i32) -> (i32, i32) {
    %c0_i32 = arith.constant 0 : i32
    %c0_i32_0 = arith.constant 0 : i32
    %c0_i32_1 = arith.constant 0 : i32
    return %c0_i32, %c0_i32_0 : i32, i32
  }
  func.func @transform_7(%arg0: i32) -> (i32, i32) {
    %c0_i32 = arith.constant 0 : i32
    %c0_i32_0 = arith.constant 0 : i32
    %c0_i32_1 = arith.constant 0 : i32
    return %c0_i32, %c0_i32_0 : i32, i32
  }
  func.func @transform_8(%arg0: i32) -> (i32, i32) {
    %c0_i32 = arith.constant 0 : i32
    %c0_i32_0 = arith.constant 0 : i32
    %c0_i32_1 = arith.constant 0 : i32
    return %c0_i32, %c0_i32_0 : i32, i32
  }
  func.func @transform_9(%arg0: i32) -> (i32, i32) {
    %c0_i32 = arith.constant 0 : i32
    %c0_i32_0 = arith.constant 0 : i32
    %c0_i32_1 = arith.constant 0 : i32
    return %c0_i32, %c0_i32_0 : i32, i32
  }
  func.func @transform_10(%arg0: i32) -> (i32, i32) {
    %c0_i32 = arith.constant 0 : i32
    %c0_i32_0 = arith.constant 0 : i32
    %c0_i32_1 = arith.constant 0 : i32
    return %c0_i32, %c0_i32_0 : i32, i32
  }
  func.func @transform_11(%arg0: i32) -> (i32, i32) {
    %c0_i32 = arith.constant 0 : i32
    %c0_i32_0 = arith.constant 0 : i32
    %c0_i32_1 = arith.constant 0 : i32
    return %c0_i32, %c0_i32_0 : i32, i32
  }
  func.func @transform_12(%arg0: i32) -> (i32, i32) {
    %c0_i32 = arith.constant 0 : i32
    %c0_i32_0 = arith.constant 0 : i32
    %c0_i32_1 = arith.constant 0 : i32
    return %c0_i32, %c0_i32_0 : i32, i32
  }
  func.func @transform_13(%arg0: i32) -> (i32, i32) {
    %c0_i32 = arith.constant 0 : i32
    %c0_i32_0 = arith.constant 0 : i32
    %c0_i32_1 = arith.constant 0 : i32
    return %c0_i32, %c0_i32_0 : i32, i32
  }
  func.func @transform_14(%arg0: i32) -> (i32, i32) {
    %c0_i32 = arith.constant 0 : i32
    %c0_i32_0 = arith.constant 0 : i32
    %c0_i32_1 = arith.constant 0 : i32
    return %c0_i32, %c0_i32_0 : i32, i32
  }
  func.func @transform_15(%arg0: i32) -> (i32, i32, i32) {
    %c0_i32 = arith.constant 0 : i32
    %c0_i32_0 = arith.constant 0 : i32
    %c0_i32_1 = arith.constant 0 : i32
    return %arg0, %c0_i32, %c0_i32_0 : i32, i32, i32
  }
}

</mosaic_0001>

<llo_original>
// kernel: encoder_layer_forward.1
$region0: #{encoder_layer_forward.1}
  #allocation0 [shape = 'u32[]', space=smem, size = 0x4, offset = 0x4, fixed_abs, tag = 'smem constant byte address 0x4 - core index']
  #allocation1 [shape = 'u32[72,128]{1,0:T(1,128)}', space=vmem, size = 0x9000, scoped, tag = 'internal scratch']
  %s0 = inlined_call_operand.hbm [shape: f32[2,8,32], index: 0, kind: input, shape index: {}]
  %s1 = inlined_call_operand.hbm [shape: f32[2,8,8], index: 1, kind: input, shape index: {}]
  %s2 = inlined_call_operand.hbm [shape: f32[2,8,8], index: 2, kind: input, shape index: {}]
  %s3 = inlined_call_operand.vmem [shape: f32[32,32], index: 3, kind: input, shape index: {}]
  %s4 = inlined_call_operand.vmem [shape: f32[32,32], index: 4, kind: input, shape index: {}]
  %s5 = inlined_call_operand.vmem [shape: f32[32,32], index: 5, kind: input, shape index: {}]
  %s6 = inlined_call_operand.vmem [shape: f32[1,32], index: 6, kind: input, shape index: {}]
  %s7 = inlined_call_operand.vmem [shape: f32[1,32], index: 7, kind: input, shape index: {}]
  %s8 = inlined_call_operand.vmem [shape: f32[1,32], index: 8, kind: input, shape index: {}]
  %s9 = inlined_call_operand.vmem [shape: f32[1,32], index: 9, kind: input, shape index: {}]
  %s10 = inlined_call_operand.vmem [shape: f32[1,32], index: 10, kind: input, shape index: {}]
  %s11 = inlined_call_operand.hbm [shape: f32[32,64], index: 11, kind: input, shape index: {}]
  %s12 = inlined_call_operand.hbm [shape: f32[1,64], index: 12, kind: input, shape index: {}]
  %s13 = inlined_call_operand.vmem [shape: f32[64,32], index: 13, kind: input, shape index: {}]
  %s14 = inlined_call_operand.hbm [shape: f32[1,32], index: 14, kind: input, shape index: {}]
  %s15 = inlined_call_operand.hbm [shape: f32[2,8,32], index: 15, kind: output, shape index: {}]
  %s16 = sld [smem:[#allocation0]]
  $region117: #{encoder_layer_forward.1} parent=0
    _
  %s18 = ssub.s32 1, %s16
  %s19 = scalar_select 0, %s18, %s16
  $region1: #{encoder_layer_forward.1} parent=0
    #allocation2 [shape = 'u8[8192]{0}', space=vmem, size = 0x2000, scoped, tag = 'input window, operand 0']
    #allocation3 [shape = 's32[2]{0}', space=sflag, size = 0x8, scoped, tag = 'scoped memory for encoder_layer_forward.1']
    #allocation4 [shape = 's32[2]{0}', space=sflag, size = 0x8, scoped, tag = 'scoped memory for encoder_layer_forward.1']
    #allocation5 [shape = 'u8[8192]{0}', space=vmem, size = 0x2000, scoped, tag = 'input window, operand 1']
    #allocation6 [shape = 's32[2]{0}', space=sflag, size = 0x8, scoped, tag = 'scoped memory for encoder_layer_forward.1']
    #allocation7 [shape = 'u8[8192]{0}', space=vmem, size = 0x2000, scoped, tag = 'input window, operand 2']
    #allocation8 [shape = 'u8[16384]{0}', space=vmem, size = 0x4000, scoped, tag = 'input window, operand 11, single buffered']
    #allocation9 [shape = 's32[1]{0}', space=sflag, size = 0x4, scoped, tag = 'scoped memory for encoder_layer_forward.1']
    #allocation10 [shape = 'u8[512]{0}', space=vmem, size = 0x400, scoped, tag = 'input window, operand 12, single buffered']
    #allocation11 [shape = 'u8[512]{0}', space=vmem, size = 0x400, scoped, tag = 'input window, operand 14, single buffered']
    #allocation12 [shape = 's32[1]{0}', space=sflag, size = 0x4, scoped, tag = 'scoped memory for encoder_layer_forward.1']
    #allocation13 [shape = 'u8[8192]{0}', space=vmem, size = 0x2000, scoped, tag = 'output window, operand 0']
    %20 = vsyncpa [#allocation3], 0
    %s21 = scalar_lea.sflag [#allocation3], 1
    %22 = vsyncpa %s21, 0
    %23 = vsyncpa [#allocation6], 0
    %s24 = scalar_lea.sflag [#allocation6], 1
    %25 = vsyncpa %s24, 0
    %26 = vsyncpa [#allocation9], 0
    %27 = vsyncpa [#allocation12], 0
    %28 = vsyncpa [#allocation4], 0
    %s29 = scalar_lea.sflag [#allocation4], 1
    %30 = vsyncpa %s29, 0
    loop: start=0, step=1, limit=4
    $region2: #{encoder_layer_forward.1} parent=1 // loop_pre_header
      _
    $region3: #{encoder_layer_forward.1} parent=1 // loop_header
      %s32 = sphi 0, %s36
      %p33 = scmp.ge.s32.totalorder %s32, 4
      %s42 = sphi 0, %s44
      %s45 = sphi 0, %s42
      %s46 = sphi 0, %s45
      %s62 = sphi 0, %s46
      %s68 = sphi 0, %s70
      %s71 = sphi 0, %s68
      %s72 = sphi 0, %s71
      %s88 = sphi 0, %s72
      %s94 = sphi 0, %s96
      %s97 = sphi 0, %s94
      %s98 = sphi 0, %s97
      %s114 = sphi 0, %s98
      %s118 = sphi 0, %s118
      %s120 = sphi 0, %s118
      %s121 = sphi 0, %s120
      %s135 = sphi 0, %s121
      %s139 = sphi 0, %s139
      %s141 = sphi 0, %s139
      %s142 = sphi 0, %s141
      %s156 = sphi 0, %s142
      %s160 = sphi 0, %s160
      %s162 = sphi 0, %s160
      %s163 = sphi 0, %s162
      %s177 = sphi 0, %s163
      %s181 = sphi 0, %s181
      %s183 = sphi 0, %s181
      %s184 = sphi 0, %s183
      %s198 = sphi 0, %s184
      %s202 = sphi 0, %s202
      %s204 = sphi 0, %s202
      %s205 = sphi 0, %s204
      %s219 = sphi 0, %s205
      %s223 = sphi 0, %s223
      %s225 = sphi 0, %s223
      %s226 = sphi 0, %s225
      %s240 = sphi 0, %s226
      %s244 = sphi 0, %s244
      %s246 = sphi 0, %s244
      %s247 = sphi 0, %s246
      %s261 = sphi 0, %s247
      %s265 = sphi 0, %s265
      %s267 = sphi 0, %s265
      %s268 = sphi 0, %s267
      %s282 = sphi 0, %s268
      %s286 = sphi 0, %s286
      %s288 = sphi 0, %s286
      %s289 = sphi 0, %s288
      %s303 = sphi 0, %s289
      %s307 = sphi 0, %s307
      %s309 = sphi 0, %s307
      %s310 = sphi 0, %s309
      %s324 = sphi 0, %s310
      %s328 = sphi 0, %s328
      %s330 = sphi 0, %s328
      %s331 = sphi 0, %s330
      %s345 = sphi 0, %s331
      %s349 = sphi 0, %s349
      %s351 = sphi 0, %s349
      %s352 = sphi 0, %s351
      %s366 = sphi 0, %s352
      %s372 = sphi 0, %s374
      %s375 = sphi 0, %s372
      %s376 = sphi 0, %s375
      %s392 = sphi 0, %s376
    $region4: #{encoder_layer_forward.1} parent=1 // loop_header_branch
      %35 = sbr.rel (%p33) target = $region8
    $region5: #{encoder_layer_forward.1} parent=1 // loop_body
      %s37 = ssub.s32 %s32, 1
      %s38 = ssub.s32 %s32, 2
      %s39 = sadd.s32 %s32, 1
      %s40 = ssub.s32 %s32, %s39
      %p41 = scmp.eq.s32.totalorder %s40, 0
      %s43 = sadd.s32 %s42, 1
      %s44 = scalar_select %p41, %s42, %s43
      %p47 = pneg %p41
      %p48 = scmp.eq.s32.totalorder %s32, 1
      %p49 = por %p47, %p48
      %p50 = scmp.ne.s32.totalorder %s42, %s45
      %p51 = scmp.eq.s32.totalorder %s32, 0
      %p52 = por %p50, %p51
      %p53 = scmp.ne.s32.totalorder %s42, %s45
      %p54 = scmp.eq.s32.totalorder %s37, 1
      %p55 = por %p53, %p54
      %p56 = scmp.ne.s32.totalorder %s45, %s46
      %p57 = scmp.eq.s32.totalorder %s37, 0
      %p58 = por %p56, %p57
      %p59 = scmp.ne.s32.totalorder %s45, %s46
      %p60 = scmp.eq.s32.totalorder %s38, 1
      %p61 = por %p59, %p60
      %p63 = scmp.ne.s32.totalorder %s46, %s62
      %p64 = scmp.eq.s32.totalorder %s38, 0
      %p65 = por %p63, %p64
      %s66 = ssub.s32 %s32, %s39
      %p67 = scmp.eq.s32.totalorder %s66, 0
      %s69 = sadd.s32 %s68, 1
      %s70 = scalar_select %p67, %s68, %s69
      %p73 = pneg %p67
      %p74 = scmp.eq.s32.totalorder %s32, 1
      %p75 = por %p73, %p74
      %p76 = scmp.ne.s32.totalorder %s68, %s71
      %p77 = scmp.eq.s32.totalorder %s32, 0
      %p78 = por %p76, %p77
      %p79 = scmp.ne.s32.totalorder %s68, %s71
      %p80 = scmp.eq.s32.totalorder %s37, 1
      %p81 = por %p79, %p80
      %p82 = scmp.ne.s32.totalorder %s71, %s72
      %p83 = scmp.eq.s32.totalorder %s37, 0
      %p84 = por %p82, %p83
      %p85 = scmp.ne.s32.totalorder %s71, %s72
      %p86 = scmp.eq.s32.totalorder %s38, 1
      %p87 = por %p85, %p86
      %p89 = scmp.ne.s32.totalorder %s72, %s88
      %p90 = scmp.eq.s32.totalorder %s38, 0
      %p91 = por %p89, %p90
      %s92 = ssub.s32 %s32, %s39
      %p93 = scmp.eq.s32.totalorder %s92, 0
      %s95 = sadd.s32 %s94, 1
      %s96 = scalar_select %p93, %s94, %s95
      %p99 = pneg %p93
      %p100 = scmp.eq.s32.totalorder %s32, 1
      %p101 = por %p99, %p100
      %p102 = scmp.ne.s32.totalorder %s94, %s97
      %p103 = scmp.eq.s32.totalorder %s32, 0
      %p104 = por %p102, %p103
      %p105 = scmp.ne.s32.totalorder %s94, %s97
      %p106 = scmp.eq.s32.totalorder %s37, 1
      %p107 = por %p105, %p106
      %p108 = scmp.ne.s32.totalorder %s97, %s98
      %p109 = scmp.eq.s32.totalorder %s37, 0
      %p110 = por %p108, %p109
      %p111 = scmp.ne.s32.totalorder %s97, %s98
      %p112 = scmp.eq.s32.totalorder %s38, 1
      %p113 = por %p111, %p112
      %p115 = scmp.ne.s32.totalorder %s98, %s114
      %p116 = scmp.eq.s32.totalorder %s38, 0
      %p117 = por %p115, %p116
      %s119 = sadd.s32 %s118, 1
      %p122 = scmp.eq.s32.totalorder %s32, 1
      %p123 = scmp.ne.s32.totalorder %s118, %s120
      %p124 = scmp.eq.s32.totalorder %s32, 0
      %p125 = por %p123, %p124
      %p126 = scmp.ne.s32.totalorder %s118, %s120
      %p127 = scmp.eq.s32.totalorder %s37, 1
      %p128 = por %p126, %p127
      %p129 = scmp.ne.s32.totalorder %s120, %s121
      %p130 = scmp.eq.s32.totalorder %s37, 0
      %p131 = por %p129, %p130
      %p132 = scmp.ne.s32.totalorder %s120, %s121
      %p133 = scmp.eq.s32.totalorder %s38, 1
      %p134 = por %p132, %p133
      %p136 = scmp.ne.s32.totalorder %s121, %s135
      %p137 = scmp.eq.s32.totalorder %s38, 0
      %p138 = por %p136, %p137
      %s140 = sadd.s32 %s139, 1
      %p143 = scmp.eq.s32.totalorder %s32, 1
      %p144 = scmp.ne.s32.totalorder %s139, %s141
      %p145 = scmp.eq.s32.totalorder %s32, 0
      %p146 = por %p144, %p145
      %p147 = scmp.ne.s32.totalorder %s139, %s141
      %p148 = scmp.eq.s32.totalorder %s37, 1
      %p149 = por %p147, %p148
      %p150 = scmp.ne.s32.totalorder %s141, %s142
      %p151 = scmp.eq.s32.totalorder %s37, 0
      %p152 = por %p150, %p151
      %p153 = scmp.ne.s32.totalorder %s141, %s142
      %p154 = scmp.eq.s32.totalorder %s38, 1
      %p155 = por %p153, %p154
      %p157 = scmp.ne.s32.totalorder %s142, %s156
      %p158 = scmp.eq.s32.totalorder %s38, 0
      %p159 = por %p157, %p158
      %s161 = sadd.s32 %s160, 1
      %p164 = scmp.eq.s32.totalorder %s32, 1
      %p165 = scmp.ne.s32.totalorder %s160, %s162
      %p166 = scmp.eq.s32.totalorder %s32, 0
      %p167 = por %p165, %p166
      %p168 = scmp.ne.s32.totalorder %s160, %s162
      %p169 = scmp.eq.s32.totalorder %s37, 1
      %p170 = por %p168, %p169
      %p171 = scmp.ne.s32.totalorder %s162, %s163
      %p172 = scmp.eq.s32.totalorder %s37, 0
      %p173 = por %p171, %p172
      %p174 = scmp.ne.s32.totalorder %s162, %s163
      %p175 = scmp.eq.s32.totalorder %s38, 1
      %p176 = por %p174, %p175
      %p178 = scmp.ne.s32.totalorder %s163, %s177
      %p179 = scmp.eq.s32.totalorder %s38, 0
      %p180 = por %p178, %p179
      %s182 = sadd.s32 %s181, 1
      %p185 = scmp.eq.s32.totalorder %s32, 1
      %p186 = scmp.ne.s32.totalorder %s181, %s183
      %p187 = scmp.eq.s32.totalorder %s32, 0
      %p188 = por %p186, %p187
      %p189 = scmp.ne.s32.totalorder %s181, %s183
      %p190 = scmp.eq.s32.totalorder %s37, 1
      %p191 = por %p189, %p190
      %p192 = scmp.ne.s32.totalorder %s183, %s184
      %p193 = scmp.eq.s32.totalorder %s37, 0
      %p194 = por %p192, %p193
      %p195 = scmp.ne.s32.totalorder %s183, %s184
      %p196 = scmp.eq.s32.totalorder %s38, 1
      %p197 = por %p195, %p196
      %p199 = scmp.ne.s32.totalorder %s184, %s198
      %p200 = scmp.eq.s32.totalorder %s38, 0
      %p201 = por %p199, %p200
      %s203 = sadd.s32 %s202, 1
      %p206 = scmp.eq.s32.totalorder %s32, 1
      %p207 = scmp.ne.s32.totalorder %s202, %s204
      %p208 = scmp.eq.s32.totalorder %s32, 0
      %p209 = por %p207, %p208
      %p210 = scmp.ne.s32.totalorder %s202, %s204
      %p211 = scmp.eq.s32.totalorder %s37, 1
      %p212 = por %p210, %p211
      %p213 = scmp.ne.s32.totalorder %s204, %s205
      %p214 = scmp.eq.s32.totalorder %s37, 0
      %p215 = por %p213, %p214
      %p216 = scmp.ne.s32.totalorder %s204, %s205
      %p217 = scmp.eq.s32.totalorder %s38, 1
      %p218 = por %p216, %p217
      %p220 = scmp.ne.s32.totalorder %s205, %s219
      %p221 = scmp.eq.s32.totalorder %s38, 0
      %p222 = por %p220, %p221
      %s224 = sadd.s32 %s223, 1
      %p227 = scmp.eq.s32.totalorder %s32, 1
      %p228 = scmp.ne.s32.totalorder %s223, %s225
      %p229 = scmp.eq.s32.totalorder %s32, 0
      %p230 = por %p228, %p229
      %p231 = scmp.ne.s32.totalorder %s223, %s225
      %p232 = scmp.eq.s32.totalorder %s37, 1
      %p233 = por %p231, %p232
      %p234 = scmp.ne.s32.totalorder %s225, %s226
      %p235 = scmp.eq.s32.totalorder %s37, 0
      %p236 = por %p234, %p235
      %p237 = scmp.ne.s32.totalorder %s225, %s226
      %p238 = scmp.eq.s32.totalorder %s38, 1
      %p239 = por %p237, %p238
      %p241 = scmp.ne.s32.totalorder %s226, %s240
      %p242 = scmp.eq.s32.totalorder %s38, 0
      %p243 = por %p241, %p242
      %s245 = sadd.s32 %s244, 1
      %p248 = scmp.eq.s32.totalorder %s32, 1
      %p249 = scmp.ne.s32.totalorder %s244, %s246
      %p250 = scmp.eq.s32.totalorder %s32, 0
      %p251 = por %p249, %p250
      %p252 = scmp.ne.s32.totalorder %s244, %s246
      %p253 = scmp.eq.s32.totalorder %s37, 1
      %p254 = por %p252, %p253
      %p255 = scmp.ne.s32.totalorder %s246, %s247
      %p256 = scmp.eq.s32.totalorder %s37, 0
      %p257 = por %p255, %p256
      %p258 = scmp.ne.s32.totalorder %s246, %s247
      %p259 = scmp.eq.s32.totalorder %s38, 1
      %p260 = por %p258, %p259
      %p262 = scmp.ne.s32.totalorder %s247, %s261
      %p263 = scmp.eq.s32.totalorder %s38, 0
      %p264 = por %p262, %p263
      %s266 = sadd.s32 %s265, 1
      %p269 = scmp.eq.s32.totalorder %s32, 1
      %p270 = scmp.ne.s32.totalorder %s265, %s267
      %p271 = scmp.eq.s32.totalorder %s32, 0
      %p272 = por %p270, %p271
      %p273 = scmp.ne.s32.totalorder %s265, %s267
      %p274 = scmp.eq.s32.totalorder %s37, 1
      %p275 = por %p273, %p274
      %p276 = scmp.ne.s32.totalorder %s267, %s268
      %p277 = scmp.eq.s32.totalorder %s37, 0
      %p278 = por %p276, %p277
      %p279 = scmp.ne.s32.totalorder %s267, %s268
      %p280 = scmp.eq.s32.totalorder %s38, 1
      %p281 = por %p279, %p280
      %p283 = scmp.ne.s32.totalorder %s268, %s282
      %p284 = scmp.eq.s32.totalorder %s38, 0
      %p285 = por %p283, %p284
      %s287 = sadd.s32 %s286, 1
      %p290 = scmp.eq.s32.totalorder %s32, 1
      %p291 = scmp.ne.s32.totalorder %s286, %s288
      %p292 = scmp.eq.s32.totalorder %s32, 0
      %p293 = por %p291, %p292
      %p294 = scmp.ne.s32.totalorder %s286, %s288
      %p295 = scmp.eq.s32.totalorder %s37, 1
      %p296 = por %p294, %p295
      %p297 = scmp.ne.s32.totalorder %s288, %s289
      %p298 = scmp.eq.s32.totalorder %s37, 0
      %p299 = por %p297, %p298
      %p300 = scmp.ne.s32.totalorder %s288, %s289
      %p301 = scmp.eq.s32.totalorder %s38, 1
      %p302 = por %p300, %p301
      %p304 = scmp.ne.s32.totalorder %s289, %s303
      %p305 = scmp.eq.s32.totalorder %s38, 0
      %p306 = por %p304, %p305
      %s308 = sadd.s32 %s307, 1
      %p311 = scmp.eq.s32.totalorder %s32, 1
      %p312 = scmp.ne.s32.totalorder %s307, %s309
      %p313 = scmp.eq.s32.totalorder %s32, 0
      %p314 = por %p312, %p313
      %p315 = scmp.ne.s32.totalorder %s307, %s309
      %p316 = scmp.eq.s32.totalorder %s37, 1
      %p317 = por %p315, %p316
      %p318 = scmp.ne.s32.totalorder %s309, %s310
      %p319 = scmp.eq.s32.totalorder %s37, 0
      %p320 = por %p318, %p319
      %p321 = scmp.ne.s32.totalorder %s309, %s310
      %p322 = scmp.eq.s32.totalorder %s38, 1
      %p323 = por %p321, %p322
      %p325 = scmp.ne.s32.totalorder %s310, %s324
      %p326 = scmp.eq.s32.totalorder %s38, 0
      %p327 = por %p325, %p326
      %s329 = sadd.s32 %s328, 1
      %p332 = scmp.eq.s32.totalorder %s32, 1
      %p333 = scmp.ne.s32.totalorder %s328, %s330
      %p334 = scmp.eq.s32.totalorder %s32, 0
      %p335 = por %p333, %p334
      %p336 = scmp.ne.s32.totalorder %s328, %s330
      %p337 = scmp.eq.s32.totalorder %s37, 1
      %p338 = por %p336, %p337
      %p339 = scmp.ne.s32.totalorder %s330, %s331
      %p340 = scmp.eq.s32.totalorder %s37, 0
      %p341 = por %p339, %p340
      %p342 = scmp.ne.s32.totalorder %s330, %s331
      %p343 = scmp.eq.s32.totalorder %s38, 1
      %p344 = por %p342, %p343
      %p346 = scmp.ne.s32.totalorder %s331, %s345
      %p347 = scmp.eq.s32.totalorder %s38, 0
      %p348 = por %p346, %p347
      %s350 = sadd.s32 %s349, 1
      %p353 = scmp.eq.s32.totalorder %s32, 1
      %p354 = scmp.ne.s32.totalorder %s349, %s351
      %p355 = scmp.eq.s32.totalorder %s32, 0
      %p356 = por %p354, %p355
      %p357 = scmp.ne.s32.totalorder %s349, %s351
      %p358 = scmp.eq.s32.totalorder %s37, 1
      %p359 = por %p357, %p358
      %p360 = scmp.ne.s32.totalorder %s351, %s352
      %p361 = scmp.eq.s32.totalorder %s37, 0
      %p362 = por %p360, %p361
      %p363 = scmp.ne.s32.totalorder %s351, %s352
      %p364 = scmp.eq.s32.totalorder %s38, 1
      %p365 = por %p363, %p364
      %p367 = scmp.ne.s32.totalorder %s352, %s366
      %p368 = scmp.eq.s32.totalorder %s38, 0
      %p369 = por %p367, %p368
      %s370 = ssub.s32 %s32, %s39
      %p371 = scmp.eq.s32.totalorder %s370, 0
      %s373 = sadd.s32 %s372, 1
      %s374 = scalar_select %p371, %s372, %s373
      %p377 = pneg %p371
      %p378 = scmp.eq.s32.totalorder %s32, 1
      %p379 = por %p377, %p378
      %p380 = scmp.ne.s32.totalorder %s372, %s375
      %p381 = scmp.eq.s32.totalorder %s32, 0
      %p382 = por %p380, %p381
      %p383 = scmp.ne.s32.totalorder %s372, %s375
      %p384 = scmp.eq.s32.totalorder %s37, 1
      %p385 = por %p383, %p384
      %p386 = scmp.ne.s32.totalorder %s375, %s376
      %p387 = scmp.eq.s32.totalorder %s37, 0
      %p388 = por %p386, %p387
      %p389 = scmp.ne.s32.totalorder %s375, %s376
      %p390 = scmp.eq.s32.totalorder %s38, 1
      %p391 = por %p389, %p390
      %p393 = scmp.ne.s32.totalorder %s376, %s392
      %p394 = scmp.eq.s32.totalorder %s38, 0
      %p395 = por %p393, %p394
      %p396 = scmp.le.s32.totalorder 1, %s32
      %p397 = scmp.lt.s32.totalorder %s32, 3
      %p398 = pnand %p396, %p397
      %p399 = pneg %p398
      // Predicated region
      $region9: #{encoder_layer_forward.1} parent=5 // pred_check
        _
      $region10: #{encoder_layer_forward.1} parent=5 // pred_check_branch
        %401 = sbr.rel (%p398) target = $region12
      $region11: #{encoder_layer_forward.1} parent=5 // pred_region
        %s402 = ssub.s32 %s32, 1
        // Predicated region
        $region13: #{encoder_layer_forward.1} parent=11 // pred_check
          %p403 = pneg %p131
        $region14: #{encoder_layer_forward.1} parent=11 // pred_check_branch
          %405 = sbr.rel (%p403) target = $region16
        $region15: #{encoder_layer_forward.1} parent=11 // pred_region
          _
        $region16: #{encoder_layer_forward.1} parent=11 // pred_fallthru
          _
        // Predicated region
        $region17: #{encoder_layer_forward.1} parent=11 // pred_check
          %p406 = pneg %p152
        $region18: #{encoder_layer_forward.1} parent=11 // pred_check_branch
          %408 = sbr.rel (%p406) target = $region20
        $region19: #{encoder_layer_forward.1} parent=11 // pred_region
          _
        $region20: #{encoder_layer_forward.1} parent=11 // pred_fallthru
          _
        // Predicated region
        $region21: #{encoder_layer_forward.1} parent=11 // pred_check
          %p409 = pneg %p173
        $region22: #{encoder_layer_forward.1} parent=11 // pred_check_branch
          %411 = sbr.rel (%p409) target = $region24
        $region23: #{encoder_layer_forward.1} parent=11 // pred_region
          _
        $region24: #{encoder_layer_forward.1} parent=11 // pred_fallthru
          _
        // Predicated region
        $region25: #{encoder_layer_forward.1} parent=11 // pred_check
          %p412 = pneg %p194
        $region26: #{encoder_layer_forward.1} parent=11 // pred_check_branch
          %414 = sbr.rel (%p412) target = $region28
        $region27: #{encoder_layer_forward.1} parent=11 // pred_region
          _
        $region28: #{encoder_layer_forward.1} parent=11 // pred_fallthru
          _
        // Predicated region
        $region29: #{encoder_layer_forward.1} parent=11 // pred_check
          %p415 = pneg %p215
        $region30: #{encoder_layer_forward.1} parent=11 // pred_check_branch
          %417 = sbr.rel (%p415) target = $region32
        $region31: #{encoder_layer_forward.1} parent=11 // pred_region
          _
        $region32: #{encoder_layer_forward.1} parent=11 // pred_fallthru
          _
        // Predicated region
        $region33: #{encoder_layer_forward.1} parent=11 // pred_check
          %p418 = pneg %p236
        $region34: #{encoder_layer_forward.1} parent=11 // pred_check_branch
          %420 = sbr.rel (%p418) target = $region36
        $region35: #{encoder_layer_forward.1} parent=11 // pred_region
          _
        $region36: #{encoder_layer_forward.1} parent=11 // pred_fallthru
          _
        // Predicated region
        $region37: #{encoder_layer_forward.1} parent=11 // pred_check
          %p421 = pneg %p257
        $region38: #{encoder_layer_forward.1} parent=11 // pred_check_branch
          %423 = sbr.rel (%p421) target = $region40
        $region39: #{encoder_layer_forward.1} parent=11 // pred_region
          _
        $region40: #{encoder_layer_forward.1} parent=11 // pred_fallthru
          _
        // Predicated region
        $region41: #{encoder_layer_forward.1} parent=11 // pred_check
          %p424 = pneg %p278
        $region42: #{encoder_layer_forward.1} parent=11 // pred_check_branch
          %426 = sbr.rel (%p424) target = $region44
        $region43: #{encoder_layer_forward.1} parent=11 // pred_region
          _
        $region44: #{encoder_layer_forward.1} parent=11 // pred_fallthru
          _
        // Predicated region
        $region45: #{encoder_layer_forward.1} parent=11 // pred_check
          %p427 = pneg %p299
        $region46: #{encoder_layer_forward.1} parent=11 // pred_check_branch
          %429 = sbr.rel (%p427) target = $region48
        $region47: #{encoder_layer_forward.1} parent=11 // pred_region
          %431 = vsyncadd [#allocation9], 0
          %s432 = sshll.u32 %s11, 4
          %s433 = int_to_ptr.hbm [resolvable:$true] %s432
          %s434 = sshll.u32 [#allocation8], 4
          %s435 = int_to_ptr.vmem [resolvable:$true] %s434
          %440 = dma.hbm_to_vmem [thread:$0]  %s433, 512, %s435, [#allocation9], 128, 128, 8
        $region48: #{encoder_layer_forward.1} parent=11 // pred_fallthru
          _
        // Predicated region
        $region49: #{encoder_layer_forward.1} parent=11 // pred_check
          %p441 = pneg %p320
        $region50: #{encoder_layer_forward.1} parent=11 // pred_check_branch
          %443 = sbr.rel (%p441) target = $region52
        $region51: #{encoder_layer_forward.1} parent=11 // pred_region
          %445 = vsyncadd [#allocation9], 0
          %s447 = sshll.u32 %s12, 4
          %s448 = int_to_ptr.hbm [resolvable:$true] %s447
          %s449 = sshll.u32 [#allocation10], 4
          %s450 = int_to_ptr.vmem [resolvable:$true] %s449
          %452 = dma.hbm_to_vmem [thread:$0]  %s448, 16, %s450, [#allocation9]
        $region52: #{encoder_layer_forward.1} parent=11 // pred_fallthru
          _
        // Predicated region
        $region53: #{encoder_layer_forward.1} parent=11 // pred_check
          %p453 = pneg %p341
        $region54: #{encoder_layer_forward.1} parent=11 // pred_check_branch
          %455 = sbr.rel (%p453) target = $region56
        $region55: #{encoder_layer_forward.1} parent=11 // pred_region
          _
        $region56: #{encoder_layer_forward.1} parent=11 // pred_fallthru
          _
        // Predicated region
        $region57: #{encoder_layer_forward.1} parent=11 // pred_check
          %p456 = pneg %p362
        $region58: #{encoder_layer_forward.1} parent=11 // pred_check_branch
          %458 = sbr.rel (%p456) target = $region60
        $region59: #{encoder_layer_forward.1} parent=11 // pred_region
          %460 = vsyncadd [#allocation12], 0
          %s462 = sshll.u32 %s14, 4
          %s463 = int_to_ptr.hbm [resolvable:$true] %s462
          %s464 = sshll.u32 [#allocation11], 4
          %s465 = int_to_ptr.vmem [resolvable:$true] %s464
          %467 = dma.hbm_to_vmem [thread:$0]  %s463, 16, %s465, [#allocation12]
        $region60: #{encoder_layer_forward.1} parent=11 // pred_fallthru
          _
      $region12: #{encoder_layer_forward.1} parent=5 // pred_fallthru
        _
      %p468 = scmp.lt.s32.totalorder %s32, 2
      // Predicated region
      $region61: #{encoder_layer_forward.1} parent=5 // pred_check
        %p469 = pneg %p468
      $region62: #{encoder_layer_forward.1} parent=5 // pred_check_branch
        %471 = sbr.rel (%p469) target = $region64
      $region63: #{encoder_layer_forward.1} parent=5 // pred_region
        // Predicated region
        $region65: #{encoder_layer_forward.1} parent=63 // pred_check
          %p472 = pneg %p52
        $region66: #{encoder_layer_forward.1} parent=63 // pred_check_branch
          %474 = sbr.rel (%p472) target = $region68
        $region67: #{encoder_layer_forward.1} parent=63 // pred_region
          %s475 = sand.u32 %s42, 1
          %s476 = scalar_lea.sflag [#allocation3], %s475
          %s477 = sand.u32 %s42, 1
          %s478 = smul.addr %s477, 8
          %s479 = scalar_lea.vmem [#allocation2], %s478
          %481 = vsyncadd %s476, 0
          %s482 = smul.addr %s32, 8
          %s483 = scalar_lea.hbm %s0, %s482
          %s485 = sshll.u32 %s483, 4
          %s486 = int_to_ptr.hbm [resolvable:$true] %s485
          %s487 = sshll.u32 %s479, 4
          %s488 = int_to_ptr.vmem [resolvable:$true] %s487
          %490 = dma.hbm_to_vmem [thread:$0]  %s486, 128, %s488, %s476
        $region68: #{encoder_layer_forward.1} parent=63 // pred_fallthru
          _
        // Predicated region
        $region69: #{encoder_layer_forward.1} parent=63 // pred_check
          %p491 = pneg %p78
        $region70: #{encoder_layer_forward.1} parent=63 // pred_check_branch
          %493 = sbr.rel (%p491) target = $region72
        $region71: #{encoder_layer_forward.1} parent=63 // pred_region
          %s494 = sand.u32 %s32, 1
          %s495 = scalar_lea.sflag [#allocation6], %s494
          %s496 = sand.u32 %s68, 1
          %s497 = smul.addr %s496, 8
          %s498 = scalar_lea.vmem [#allocation5], %s497
          %500 = vsyncadd %s495, 0
          %s501 = smul.addr %s32, 8
          %s502 = scalar_lea.hbm %s1, %s501
          %s504 = sshll.u32 %s502, 4
          %s505 = int_to_ptr.hbm [resolvable:$true] %s504
          %s506 = sshll.u32 %s498, 4
          %s507 = int_to_ptr.vmem [resolvable:$true] %s506
          %509 = dma.hbm_to_vmem [thread:$0]  %s505, 128, %s507, %s495
        $region72: #{encoder_layer_forward.1} parent=63 // pred_fallthru
          _
        // Predicated region
        $region73: #{encoder_layer_forward.1} parent=63 // pred_check
          %p510 = pneg %p104
        $region74: #{encoder_layer_forward.1} parent=63 // pred_check_branch
          %512 = sbr.rel (%p510) target = $region76
        $region75: #{encoder_layer_forward.1} parent=63 // pred_region
          %s513 = sand.u32 %s32, 1
          %s514 = scalar_lea.sflag [#allocation6], %s513
          %s515 = sand.u32 %s94, 1
          %s516 = smul.addr %s515, 8
          %s517 = scalar_lea.vmem [#allocation7], %s516
          %519 = vsyncadd %s514, 0
          %s520 = smul.addr %s32, 8
          %s521 = scalar_lea.hbm %s2, %s520
          %s523 = sshll.u32 %s521, 4
          %s524 = int_to_ptr.hbm [resolvable:$true] %s523
          %s525 = sshll.u32 %s517, 4
          %s526 = int_to_ptr.vmem [resolvable:$true] %s525
          %528 = dma.hbm_to_vmem [thread:$0]  %s524, 128, %s526, %s514
        $region76: #{encoder_layer_forward.1} parent=63 // pred_fallthru
          _
      $region64: #{encoder_layer_forward.1} parent=5 // pred_fallthru
        _
      %p529 = scmp.le.s32.totalorder 1, %s32
      %p530 = scmp.lt.s32.totalorder %s32, 3
      %p531 = pnand %p529, %p530
      %p532 = pneg %p531
      // Predicated region
      $region77: #{encoder_layer_forward.1} parent=5 // pred_check
        _
      $region78: #{encoder_layer_forward.1} parent=5 // pred_check_branch
        %534 = sbr.rel (%p531) target = $region80
      $region79: #{encoder_layer_forward.1} parent=5 // pred_region
        %s535 = ssub.s32 %s32, 1
        %s536 = sand.u32 %s45, 1
        %s537 = scalar_lea.sflag [#allocation3], %s536
        %s538 = sand.u32 %s45, 1
        %s539 = smul.addr %s538, 8
        %s540 = scalar_lea.vmem [#allocation2], %s539
        // Predicated region
        $region81: #{encoder_layer_forward.1} parent=79 // pred_check
          %p541 = pneg %p58
        $region82: #{encoder_layer_forward.1} parent=79 // pred_check_branch
          %543 = sbr.rel (%p541) target = $region84
        $region83: #{encoder_layer_forward.1} parent=79 // pred_region
          %545 = dma.done %s537, 128
        $region84: #{encoder_layer_forward.1} parent=79 // pred_fallthru
          _
        %s546 = sand.u32 %s37, 1
        %s547 = scalar_lea.sflag [#allocation6], %s546
        %s548 = sand.u32 %s71, 1
        %s549 = smul.addr %s548, 8
        %s550 = scalar_lea.vmem [#allocation5], %s549
        // Predicated region
        $region85: #{encoder_layer_forward.1} parent=79 // pred_check
          %p551 = pneg %p84
        $region86: #{encoder_layer_forward.1} parent=79 // pred_check_branch
          %553 = sbr.rel (%p551) target = $region88
        $region87: #{encoder_layer_forward.1} parent=79 // pred_region
          %555 = dma.done %s547, 128
        $region88: #{encoder_layer_forward.1} parent=79 // pred_fallthru
          _
        %s556 = sand.u32 %s37, 1
        %s557 = scalar_lea.sflag [#allocation6], %s556
        %s558 = sand.u32 %s97, 1
        %s559 = smul.addr %s558, 8
        %s560 = scalar_lea.vmem [#allocation7], %s559
        // Predicated region
        $region89: #{encoder_layer_forward.1} parent=79 // pred_check
          %p561 = pneg %p110
        $region90: #{encoder_layer_forward.1} parent=79 // pred_check_branch
          %563 = sbr.rel (%p561) target = $region92
        $region91: #{encoder_layer_forward.1} parent=79 // pred_region
          %565 = dma.done %s557, 128
        $region92: #{encoder_layer_forward.1} parent=79 // pred_fallthru
          _
        // Predicated region
        $region93: #{encoder_layer_forward.1} parent=79 // pred_check
          %p566 = pneg %p299
        $region94: #{encoder_layer_forward.1} parent=79 // pred_check_branch
          %568 = sbr.rel (%p566) target = $region96
        $region95: #{encoder_layer_forward.1} parent=79 // pred_region
          %570 = dma.done [#allocation9], 512
        $region96: #{encoder_layer_forward.1} parent=79 // pred_fallthru
          _
        // Predicated region
        $region97: #{encoder_layer_forward.1} parent=79 // pred_check
          %p571 = pneg %p320
        $region98: #{encoder_layer_forward.1} parent=79 // pred_check_branch
          %573 = sbr.rel (%p571) target = $region100
        $region99: #{encoder_layer_forward.1} parent=79 // pred_region
          %575 = dma.done [#allocation9], 16
        $region100: #{encoder_layer_forward.1} parent=79 // pred_fallthru
          _
        // Predicated region
        $region101: #{encoder_layer_forward.1} parent=79 // pred_check
          %p576 = pneg %p362
        $region102: #{encoder_layer_forward.1} parent=79 // pred_check_branch
          %578 = sbr.rel (%p576) target = $region104
        $region103: #{encoder_layer_forward.1} parent=79 // pred_region
          %580 = dma.done [#allocation12], 16
        $region104: #{encoder_layer_forward.1} parent=79 // pred_fallthru
          _
        %s581 = sand.u32 %s45, 1
        %s582 = scalar_lea.sflag [#allocation3], %s581
        %s583 = sand.u32 %s45, 1
        %s584 = smul.addr %s583, 8
        %s585 = scalar_lea.vmem [#allocation2], %s584
        %p586 = pneg %p58
        %p587 = pneg %p55
        %s588 = sand.u32 %s37, 1
        %s589 = scalar_lea.sflag [#allocation6], %s588
        %s590 = sand.u32 %s71, 1
        %s591 = smul.addr %s590, 8
        %s592 = scalar_lea.vmem [#allocation5], %s591
        %p593 = pneg %p84
        %p594 = pneg %p81
        %s595 = sand.u32 %s37, 1
        %s596 = scalar_lea.sflag [#allocation6], %s595
        %s597 = sand.u32 %s97, 1
        %s598 = smul.addr %s597, 8
        %s599 = scalar_lea.vmem [#allocation7], %s598
        %p600 = pneg %p110
        %p601 = pneg %p107
        %p602 = pneg %p131
        %p603 = pneg %p128
        %p604 = pneg %p152
        %p605 = pneg %p149
        %p606 = pneg %p173
        %p607 = pneg %p170
        %p608 = pneg %p194
        %p609 = pneg %p191
        %p610 = pneg %p215
        %p611 = pneg %p212
        %p612 = pneg %p236
        %p613 = pneg %p233
        %p614 = pneg %p257
        %p615 = pneg %p254
        %p616 = pneg %p278
        %p617 = pneg %p275
        %p618 = pneg %p299
        %p619 = pneg %p296
        %p620 = pneg %p320
        %p621 = pneg %p317
        %p622 = pneg %p341
        %p623 = pneg %p338
        %p624 = pneg %p362
        %p625 = pneg %p359
        %p626 = pneg %p388
        %p627 = pneg %p385
        %s628 = sand.u32 %s375, 1
        %s629 = scalar_lea.sflag [#allocation4], %s628
        %s630 = sand.u32 %s375, 1
        %s631 = smul.addr %s630, 8
        %s632 = scalar_lea.vmem [#allocation13], %s631
        %v633 = vld [vmem:[%s540] sm:$0xff]
        %v634 = vld [vmem:[%s3] sm:$0xff]
        %v635 = vld [vmem:[%s3 + $0x8] sm:$0xff]
        %v636 = vld [vmem:[%s3 + $0x10] sm:$0xff]
        %v637 = vld [vmem:[%s3 + $0x18] sm:$0xff]
        %v638 = vld [vmem:[%s6] sm:$0x1]
        %v640 = vperm.slane %v638, 0
        %vm642 = vcmask 261120
        %v644 = vsel %vm642, %v633, 0
        %646 = vmatpush.msra.mxu0 0.0
        %647 = vmatpush.msra.mxu0 0.0
        %648 = vmatpush.msra.mxu0 0.0
        %649 = vmatpush.msra.mxu0 0.0
        %650 = vmatpush.msra.mxu0 0.0
        %651 = vmatpush.msra.mxu0 0.0
        %652 = vmatpush.msra.mxu0 0.0
        %653 = vmatpush.msra.mxu0 0.0
        %654 = vmatpush.msra.mxu0 0.0
        %655 = vmatpush.msra.mxu0 0.0
        %656 = vmatpush.msra.mxu0 0.0
        %657 = vmatpush.msra.mxu0 0.0
        %658 = vmatpush.msra.mxu0 %v637
        %659 = vmatpush.msra.mxu0 %v636
        %660 = vmatpush.msra.mxu0 %v635
        %661 = vmatpush.msra.mxu0 %v634
        %662 = vmatmul.f32.gmra.mxu0 %v644
        %v663 = vpop.f32.mrf.mxu0
        %v664 = vadd.f32 %v640, %v663
        %665 = vdwg.mxu0
        %v666 = vld [vmem:[%s4] sm:$0xff]
        %v667 = vld [vmem:[%s4 + $0x8] sm:$0xff]
        %v668 = vld [vmem:[%s4 + $0x10] sm:$0xff]
        %v669 = vld [vmem:[%s4 + $0x18] sm:$0xff]
        %v670 = vld [vmem:[%s7] sm:$0x1]
        %v672 = vperm.slane %v670, 0
        %674 = vmatpush.msra.mxu0 0.0
        %675 = vmatpush.msra.mxu0 0.0
        %676 = vmatpush.msra.mxu0 0.0
        %677 = vmatpush.msra.mxu0 0.0
        %678 = vmatpush.msra.mxu0 0.0
        %679 = vmatpush.msra.mxu0 0.0
        %680 = vmatpush.msra.mxu0 0.0
        %681 = vmatpush.msra.mxu0 0.0
        %682 = vmatpush.msra.mxu0 0.0
        %683 = vmatpush.msra.mxu0 0.0
        %684 = vmatpush.msra.mxu0 0.0
        %685 = vmatpush.msra.mxu0 0.0
        %686 = vmatpush.msra.mxu0 %v669
        %687 = vmatpush.msra.mxu0 %v668
        %688 = vmatpush.msra.mxu0 %v667
        %689 = vmatpush.msra.mxu0 %v666
        %690 = vmatmul.f32.gmra.mxu0 %v644
        %v691 = vpop.f32.mrf.mxu0
        %v692 = vadd.f32 %v672, %v691
        %693 = vdwg.mxu0
        %v694 = vld [vmem:[%s5] sm:$0xff]
        %v695 = vld [vmem:[%s5 + $0x8] sm:$0xff]
        %v696 = vld [vmem:[%s5 + $0x10] sm:$0xff]
        %v697 = vld [vmem:[%s5 + $0x18] sm:$0xff]
        %v698 = vld [vmem:[%s8] sm:$0x1]
        %v700 = vperm.slane %v698, 0
        %702 = vmatpush.msra.mxu0 0.0
        %703 = vmatpush.msra.mxu0 0.0
        %704 = vmatpush.msra.mxu0 0.0
        %705 = vmatpush.msra.mxu0 0.0
        %706 = vmatpush.msra.mxu0 0.0
        %707 = vmatpush.msra.mxu0 0.0
        %708 = vmatpush.msra.mxu0 0.0
        %709 = vmatpush.msra.mxu0 0.0
        %710 = vmatpush.msra.mxu0 0.0
        %711 = vmatpush.msra.mxu0 0.0
        %712 = vmatpush.msra.mxu0 0.0
        %713 = vmatpush.msra.mxu0 0.0
        %714 = vmatpush.msra.mxu0 %v697
        %715 = vmatpush.msra.mxu0 %v696
        %716 = vmatpush.msra.mxu0 %v695
        %717 = vmatpush.msra.mxu0 %v694
        %718 = vmatmul.f32.gmra.mxu0 %v644
        %v719 = vpop.f32.mrf.mxu0
        %v720 = vadd.f32 %v700, %v719
        %721 = vdwg.mxu0
        %v723 = vsel %vm642, %v664, 0
        %v726 = vsel %vm642, %v692, 0
        %728 = vmatpush.xpose.msra.mxu0 0.0
        %729 = vmatpush.xpose.msra.mxu0 0.0
        %730 = vmatpush.xpose.msra.mxu0 0.0
        %731 = vmatpush.xpose.msra.mxu0 0.0
        %732 = vmatpush.xpose.msra.mxu0 0.0
        %733 = vmatpush.xpose.msra.mxu0 0.0
        %734 = vmatpush.xpose.msra.mxu0 0.0
        %735 = vmatpush.xpose.msra.mxu0 0.0
        %736 = vmatpush.xpose.msra.mxu0 0.0
        %737 = vmatpush.xpose.msra.mxu0 0.0
        %738 = vmatpush.xpose.msra.mxu0 0.0
        %739 = vmatpush.xpose.msra.mxu0 0.0
        %740 = vmatpush.xpose.msra.mxu0 0.0
        %741 = vmatpush.xpose.msra.mxu0 0.0
        %742 = vmatpush.xpose.msra.mxu0 0.0
        %743 = vmatpush.xpose.msra.mxu0 %v726
        %744 = vmatmul.f32.gmra.mxu0 %v723
        %v745 = vpop.f32.mrf.mxu0
        %v746 = vadd.f32 0.0, %v745
        %747 = vdwg.mxu0
        %v748 = vmul.f32 %v746, 0.17677669
        %v749 = vld [vmem:[%s550] sm:$0xff]
        %v750 = vadd.f32 %v748, %v749
        %v751 = vld [vmem:[%s560] sm:$0xff]
        %vm752 = vcmp.ne.f32.partialorder %v751, 0.0
        %v753 = vsel %vm752, %v750, -1e+09
        %vm754 = vcmask 64512
        %v755 = vsel %vm754, %v753, -inf
        %756 = vmax.xlane.f32.xlu0 %v755
        %v757 = vpop.xlane.xlu0 %756
        %v758 = vsub.f32 %v753, %v757
        %v759 = vmul.f32 %v758, 1.442695
        %v760 = vpow.pop %v759
        %v761 = vsel %vm754, %v760, 0.0
        %762 = vadd.xlane.f32.xlu0 %v761
        %v763 = vpop.xlane.xlu0 %762
        %v764 = vrcp.pop %v763
        %v765 = vmul.f32 %v763, %v764
        %v766 = vsub.f32 1.0, %v765
        %v767 = vmul.f32 %v764, %v766
        %v768 = vadd.f32 %v764, %v767
        %vm769 = vweird.f32 %v763
        %vm770 = vweird.f32 %v764
        %vm771 = vmor %vm769, %vm770
        %v772 = vsel %vm771, %v764, %v768
        %v773 = vand.u32 2147483647, %v763
        %vm774 = vcmp.eq.f32.partialorder %v773, 8.507059e+37
        %v775 = vand.u32 %v763, 2147483648
        %v776 = vor.u32 1.1754944e-38, %v775
        %v777 = vsel %vm774, %v776, %v772
        %v778 = vmul.f32 %v760, %v777
        %v780 = vsel %vm754, %v778, 0
        %782 = vmatpush.msra.mxu0 0.0
        %783 = vmatpush.msra.mxu0 0.0
        %784 = vmatpush.msra.mxu0 0.0
        %785 = vmatpush.msra.mxu0 0.0
        %786 = vmatpush.msra.mxu0 0.0
        %787 = vmatpush.msra.mxu0 0.0
        %788 = vmatpush.msra.mxu0 0.0
        %789 = vmatpush.msra.mxu0 0.0
        %790 = vmatpush.msra.mxu0 0.0
        %791 = vmatpush.msra.mxu0 0.0
        %792 = vmatpush.msra.mxu0 0.0
        %793 = vmatpush.msra.mxu0 0.0
        %794 = vmatpush.msra.mxu0 0.0
        %795 = vmatpush.msra.mxu0 0.0
        %796 = vmatpush.msra.mxu0 0.0
        %797 = vmatpush.msra.mxu0 %v720
        %798 = vmatmul.f32.gmra.mxu0 %v780
        %v799 = vpop.f32.mrf.mxu0
        %v800 = vadd.f32 0.0, %v799
        %801 = vdwg.mxu0
        %v802 = vadd.f32 %v633, %v800
        %v803 = vsel %vm642, %v802, 0.0
        %804 = vadd.xlane.f32.xlu0 %v803
        %v805 = vpop.xlane.xlu0 %804
        %v806 = vrcp.pop 32.0
        %v807 = vmul.f32 32.0, %v806
        %v808 = vsub.f32 1.0, %v807
        %v809 = vmul.f32 %v806, %v808
        %v810 = vadd.f32 %v806, %v809
        %vm811 = vweird.f32 %v806
        %v812 = vsel %vm811, %v806, %v810
        %v813 = vmul.f32 %v805, %v812
        %v814 = vsub.f32 %v802, %v813
        %v815 = vmul.f32 %v814, %v814
        %v816 = vsel %vm642, %v815, 0.0
        %817 = vadd.xlane.f32.xlu0 %v816
        %v818 = vpop.xlane.xlu0 %817
        %v819 = vmul.f32 %v818, %v812
        %v820 = vadd.f32 %v819, 1e-05
        %v821 = vrsqrt.pop %v820
        %v822 = vmul.f32 %v821, %v820
        %v823 = vmul.f32 %v822, %v821
        %v824 = vmul.f32 0.5, %v823
        %v825 = vsub.f32 1.5, %v824
        %v826 = vmul.f32 %v821, %v825
        %vm827 = vweird.f32 %v820
        %vm828 = vweird.f32 %v821
        %vm829 = vmor %vm827, %vm828
        %v830 = vsel %vm829, %v821, %v826
        %v831 = vmul.f32 %v814, %v830
        %v832 = vld [vmem:[%s9] sm:$0x1]
        %v834 = vperm.slane %v832, 0
        %v836 = vmul.f32 %v831, %v834
        %v837 = vld [vmem:[%s10] sm:$0x1]
        %v839 = vperm.slane %v837, 0
        %v841 = vadd.f32 %v836, %v839
        %v842 = vld [vmem:[#allocation8] sm:$0xff]
        %v843 = vld [vmem:[#allocation8 + $0x8] sm:$0xff]
        %v844 = vld [vmem:[#allocation8 + $0x10] sm:$0xff]
        %v845 = vld [vmem:[#allocation8 + $0x18] sm:$0xff]
        %v846 = vld [vmem:[#allocation10] sm:$0x1]
        %v848 = vperm.slane %v846, 0
        %v851 = vsel %vm642, %v841, 0
        %853 = vmatpush.msra.mxu0 0.0
        %854 = vmatpush.msra.mxu0 0.0
        %855 = vmatpush.msra.mxu0 0.0
        %856 = vmatpush.msra.mxu0 0.0
        %857 = vmatpush.msra.mxu0 0.0
        %858 = vmatpush.msra.mxu0 0.0
        %859 = vmatpush.msra.mxu0 0.0
        %860 = vmatpush.msra.mxu0 0.0
        %861 = vmatpush.msra.mxu0 0.0
        %862 = vmatpush.msra.mxu0 0.0
        %863 = vmatpush.msra.mxu0 0.0
        %864 = vmatpush.msra.mxu0 0.0
        %865 = vmatpush.msra.mxu0 %v845
        %866 = vmatpush.msra.mxu0 %v844
        %867 = vmatpush.msra.mxu0 %v843
        %868 = vmatpush.msra.mxu0 %v842
        %869 = vmatmul.f32.gmra.mxu0 %v851
        %v870 = vpop.f32.mrf.mxu0
        %v871 = vadd.f32 %v848, %v870
        %872 = vdwg.mxu0
        %v873 = vmax.f32 %v871, 0.0
        %v874 = vld [vmem:[%s13] sm:$0xff]
        %v875 = vld [vmem:[%s13 + $0x8] sm:$0xff]
        %v876 = vld [vmem:[%s13 + $0x10] sm:$0xff]
        %v877 = vld [vmem:[%s13 + $0x18] sm:$0xff]
        %v878 = vld [vmem:[%s13 + $0x20] sm:$0xff]
        %v879 = vld [vmem:[%s13 + $0x28] sm:$0xff]
        %v880 = vld [vmem:[%s13 + $0x30] sm:$0xff]
        %v881 = vld [vmem:[%s13 + $0x38] sm:$0xff]
        %v882 = vld [vmem:[#allocation11] sm:$0x1]
        %v884 = vperm.slane %v882, 0
        %vm886 = vcmask 523264
        %v888 = vsel %vm886, %v873, 0
        %890 = vmatpush.msra.mxu0 0.0
        %891 = vmatpush.msra.mxu0 0.0
        %892 = vmatpush.msra.mxu0 0.0
        %893 = vmatpush.msra.mxu0 0.0
        %894 = vmatpush.msra.mxu0 0.0
        %895 = vmatpush.msra.mxu0 0.0
        %896 = vmatpush.msra.mxu0 0.0
        %897 = vmatpush.msra.mxu0 0.0
        %898 = vmatpush.msra.mxu0 %v881
        %899 = vmatpush.msra.mxu0 %v880
        %900 = vmatpush.msra.mxu0 %v879
        %901 = vmatpush.msra.mxu0 %v878
        %902 = vmatpush.msra.mxu0 %v877
        %903 = vmatpush.msra.mxu0 %v876
        %904 = vmatpush.msra.mxu0 %v875
        %905 = vmatpush.msra.mxu0 %v874
        %906 = vmatmul.f32.gmra.mxu0 %v888
        %v907 = vpop.f32.mrf.mxu0
        %v908 = vadd.f32 %v884, %v907
        %909 = vdwg.mxu0
        %v910 = vadd.f32 %v802, %v908
        %911 = vst.msk [vmem:[%s632] sm:$0xff] %vm642, %v910
        %s912 = sand.u32 %s375, 1
        %s913 = scalar_lea.sflag [#allocation4], %s912
        %s914 = sand.u32 %s375, 1
        %s915 = smul.addr %s914, 8
        %s916 = scalar_lea.vmem [#allocation13], %s915
        // Predicated region
        $region105: #{encoder_layer_forward.1} parent=79 // pred_check
          %p917 = pneg %p385
        $region106: #{encoder_layer_forward.1} parent=79 // pred_check_branch
          %919 = sbr.rel (%p917) target = $region108
        $region107: #{encoder_layer_forward.1} parent=79 // pred_region
          %921 = vsyncadd %s913, 0
          %s922 = smul.addr %s37, 8
          %s923 = scalar_lea.hbm %s15, %s922
          %s925 = sshll.u32 %s916, 4
          %s926 = int_to_ptr.vmem [resolvable:$true] %s925
          %s927 = sshll.u32 %s923, 4
          %s928 = int_to_ptr.hbm [resolvable:$true] %s927
          %930 = dma.vmem_to_hbm [thread:$0]  %s926, 128, %s928, %s913
        $region108: #{encoder_layer_forward.1} parent=79 // pred_fallthru
          _
      $region80: #{encoder_layer_forward.1} parent=5 // pred_fallthru
        _
      %p931 = scmp.le.s32.totalorder 2, %s32
      // Predicated region
      $region109: #{encoder_layer_forward.1} parent=5 // pred_check
        %p932 = pneg %p931
      $region110: #{encoder_layer_forward.1} parent=5 // pred_check_branch
        %934 = sbr.rel (%p932) target = $region112
      $region111: #{encoder_layer_forward.1} parent=5 // pred_region
        %s935 = ssub.s32 %s32, 2
        // Predicated region
        $region113: #{encoder_layer_forward.1} parent=111 // pred_check
          %p936 = pneg %p391
        $region114: #{encoder_layer_forward.1} parent=111 // pred_check_branch
          %938 = sbr.rel (%p936) target = $region116
        $region115: #{encoder_layer_forward.1} parent=111 // pred_region
          %s939 = sand.u32 %s376, 1
          %s940 = scalar_lea.sflag [#allocation4], %s939
          %s941 = sand.u32 %s376, 1
          %s942 = smul.addr %s941, 8
          %s943 = scalar_lea.vmem [#allocation13], %s942
          %945 = dma.done %s940, 128
        $region116: #{encoder_layer_forward.1} parent=111 // pred_fallthru
          _
      $region112: #{encoder_layer_forward.1} parent=5 // pred_fallthru
        _
    $region6: #{encoder_layer_forward.1} parent=1 // loop_footer
      %s36 = sadd.s32 1, %s32
    $region7: #{encoder_layer_forward.1} parent=1 // loop_footer_branch
      %31 = sbr.rel target = $region3
    $region8: #{encoder_layer_forward.1} parent=1 // loop_exit
      _
    %946 = vsyncpa [#allocation3], 1
    %s947 = scalar_lea.sflag [#allocation3], 1
    %948 = vsyncpa %s947, 1
    %949 = vsyncpa [#allocation6], 1
    %s950 = scalar_lea.sflag [#allocation6], 1
    %951 = vsyncpa %s950, 1
    %952 = vsyncpa [#allocation9], 1
    %953 = vsyncpa [#allocation12], 1
    %954 = vsyncpa [#allocation4], 1
    %s955 = scalar_lea.sflag [#allocation4], 1
    %956 = vsyncpa %s955, 1

</llo_original>
